<compile_context>
chip_gen: v6e
topology: v6e:2x2x1
jax: 0.10.0
libtpu: 0.0.40
codegen_flags: <defaults>
</compile_context>

<pallas_src>
import functools

import numpy as np

import jax
import jax.numpy as jnp
from jax.experimental import pallas as pl
from jax.experimental.pallas import tpu as pltpu

_LANES = 128


def _round_up(x, m):
    return ((x + m - 1) // m) * m


def _vmem_capacity_bytes():
    """Per-generation VMEM capacity (128 MiB v5e/v6e, 64 MiB v7x); safe fallback."""
    try:
        info = pltpu.get_tpu_info()
        cap = getattr(info, "vmem_capacity_bytes", None)
        if cap:
            return int(cap)
    except Exception:
        pass
    return 64 << 20  # most restrictive generation (v7x per-TC)


# --------------------------------------------------------------------------- #
# Fused-chain kernel: whole MLP in one body, tiled over batch only.
# --------------------------------------------------------------------------- #
def _mlp_fused_kernel(*refs, num_layers):
    # refs = (x_ref, w0_ref, b0_ref, w1_ref, b1_ref, ..., o_ref)
    x_ref = refs[0]
    o_ref = refs[-1]
    compute_dtype = x_ref.dtype  # MXU operand dtype (bf16 fast path on v6e/v7x)
    h = x_ref[...]
    for l in range(num_layers):
        w_ref = refs[1 + 2 * l]
        b_ref = refs[2 + 2 * l]
        # MXU matmul with f32 accumulation; bias add on the VPU in f32.
        acc = jnp.dot(h, w_ref[...], preferred_element_type=jnp.float32)
        acc = acc + b_ref[...].astype(jnp.float32)
        # TODO(synk): if `act` were provided, apply it here after every
        # non-last layer (the reference module's is_last is never True).
        if l < num_layers - 1:
            h = acc if compute_dtype == jnp.float32 else acc.astype(compute_dtype)
        else:
            o_ref[...] = acc.astype(o_ref.dtype)


def _fused_footprint_bytes(tile_b, d_in_p, padded_feature_dims, params_bytes,
                           in_item, out_item):
    """Estimated VMEM footprint of the fused chain at a given batch tile.

    Weights/biases are single-buffered (grid-invariant), activations are
    double-buffered by the pipeline, and intermediates count the f32
    accumulator plus the downcast copy with ~2x live-range overlap.
    """
    x_tile = 2 * tile_b * d_in_p * in_item
    o_tile = 2 * tile_b * padded_feature_dims[-1] * out_item
    widest = max(padded_feature_dims)
    inter = 2 * tile_b * widest * (4 + in_item)
    return params_bytes + x_tile + o_tile + inter


def _mlp_fused(x_p, pw, pb, *, tile_b, out_dtype, vmem_cap, params_bytes, footprint):
    B_p, d_in_p = x_p.shape
    d_out_p = pw[-1].shape[1]
    num_layers = len(pw)
    grid = (B_p // tile_b,)

    flops = 2 * B_p * sum(int(w.shape[0]) * int(w.shape[1]) for w in pw)
    bytes_accessed = (int(x_p.size) * x_p.dtype.itemsize
                      + params_bytes
                      + B_p * d_out_p * np.dtype(out_dtype).itemsize)
    cost = pl.CostEstimate(flops=int(flops), transcendentals=0,
                           bytes_accessed=int(bytes_accessed))

    vmem_limit = int(min(vmem_cap, max(int(footprint * 1.25) + (2 << 20), 32 << 20)))

    flat_params = [a for wb in zip(pw, pb) for a in wb]
    kernel = functools.partial(_mlp_fused_kernel, num_layers=num_layers)

    def build_specs(single_buffer_params):
        in_specs = [pl.BlockSpec((tile_b, d_in_p), lambda i: (i, 0))]
        for w in pw:
            din_p, dout_p = w.shape
            if single_buffer_params:
                # Grid-invariant operands: one resident buffer, never re-fetched.
                in_specs.append(pl.BlockSpec((din_p, dout_p), lambda i: (0, 0),
                                             pipeline_mode=pl.Buffered(1)))
                in_specs.append(pl.BlockSpec((1, dout_p), lambda i: (0, 0),
                                             pipeline_mode=pl.Buffered(1)))
            else:
                in_specs.append(pl.BlockSpec((din_p, dout_p), lambda i: (0, 0)))
                in_specs.append(pl.BlockSpec((1, dout_p), lambda i: (0, 0)))
        out_spec = pl.BlockSpec((tile_b, d_out_p), lambda i: (i, 0))
        return in_specs, out_spec

    def run(single_buffer_params):
        in_specs, out_spec = build_specs(single_buffer_params)
        return pl.pallas_call(
            kernel,
            out_shape=jax.ShapeDtypeStruct((B_p, d_out_p), out_dtype),
            grid_spec=pltpu.PrefetchScalarGridSpec(
                num_scalar_prefetch=0,
                grid=grid,
                in_specs=in_specs,
                out_specs=out_spec,
            ),
            compiler_params=pltpu.CompilerParams(
                dimension_semantics=("parallel",),  # megacore batch sharding on v7x
                vmem_limit_bytes=vmem_limit,
            ),
            cost_estimate=cost,
        )(x_p, *flat_params)

    try:
        return jax.block_until_ready(run(True))
    except Exception:
        # Single-buffered pipeline_mode unsupported on this build -> default buffering.
        return run(False)


# --------------------------------------------------------------------------- #
# Fallback: per-layer (M,N,K)-tiled matmul + bias with f32 accumulator scratch.
# Used when the fused weight chain does not fit the per-core VMEM budget.
# --------------------------------------------------------------------------- #
def _linear_kernel(x_ref, w_ref, b_ref, o_ref, acc_ref):
    @pl.when(pl.program_id(2) == 0)
    def _():
        acc_ref[...] = jnp.zeros_like(acc_ref)

    acc_ref[...] += jnp.dot(x_ref[...], w_ref[...],
                            preferred_element_type=jnp.float32)

    @pl.when(pl.program_id(2) == pl.num_programs(2) - 1)
    def _():
        o_ref[...] = (acc_ref[...] + b_ref[...].astype(jnp.float32)).astype(o_ref.dtype)


def _linear_tiled(x, w, b, *, out_dtype, vmem_cap):
    """y = x @ w + b with all dims already padded to 128-lane multiples."""
    M, K = x.shape
    K2, N = w.shape
    assert K == K2, (K, K2)
    item = x.dtype.itemsize
    sub = 32 // item
    tm = min(512, _round_up(M, sub))
    tn = 256 if N % 256 == 0 else 128
    tk = 512 if K % 512 == 0 else (256 if K % 256 == 0 else 128)
    Mp = _round_up(M, tm)
    if Mp != M:
        x = jnp.pad(x, ((0, Mp - M), (0, 0)))
    grid = (Mp // tm, N // tn, K // tk)

    foot = (2 * (tm * tk * item + tk * tn * w.dtype.itemsize
                 + tn * b.dtype.itemsize
                 + tm * tn * np.dtype(out_dtype).itemsize)
            + tm * tn * 4)
    vmem_limit = int(min(vmem_cap, max(int(foot * 1.5), 32 << 20)))

    out = pl.pallas_call(
        _linear_kernel,
        out_shape=jax.ShapeDtypeStruct((Mp, N), out_dtype),
        grid_spec=pltpu.PrefetchScalarGridSpec(
            num_scalar_prefetch=0,
            grid=grid,
            in_specs=[
                pl.BlockSpec((tm, tk), lambda i, j, k: (i, k)),
                pl.BlockSpec((tk, tn), lambda i, j, k: (k, j)),
                pl.BlockSpec((1, tn), lambda i, j, k: (0, j)),
            ],
            out_specs=pl.BlockSpec((tm, tn), lambda i, j, k: (i, j)),
            scratch_shapes=[pltpu.VMEM((tm, tn), jnp.float32)],
        ),
        compiler_params=pltpu.CompilerParams(
            dimension_semantics=("parallel", "parallel", "arbitrary"),
            vmem_limit_bytes=vmem_limit,
        ),
    )(x, w, b)
    return out[:M, :]


# --------------------------------------------------------------------------- #
# Wrapper
# --------------------------------------------------------------------------- #
def mlp_pallas(x, weights, biases, *, tile_b=None, out_dtype=None, force_tiled=False):
    """Fused MLP forward.

    x:          (B, dims[0])
    weights[l]: (dims[l], dims[l+1])   (transpose of torch nn.Linear.weight)
    biases[l]:  (dims[l+1],) or (1, dims[l+1])
    """
    B, d_in = x.shape
    num_layers = len(weights)
    d_out = weights[-1].shape[1]

    # Resolve a single compute dtype up front (no silent promotion in-kernel).
    compute_dtype = jnp.result_type(x.dtype, *[w.dtype for w in weights],
                                    *[b.dtype for b in biases])
    out_dtype = jnp.dtype(out_dtype) if out_dtype is not None else jnp.dtype(compute_dtype)
    x = x.astype(compute_dtype)
    weights = [w.astype(compute_dtype) for w in weights]
    biases = [b.astype(compute_dtype) for b in biases]
    in_item = jnp.dtype(compute_dtype).itemsize
    out_item = out_dtype.itemsize

    # ---- lane-dense zero padding of ALL feature dims (incl. d_in) => exact ----
    dims = [d_in] + [w.shape[1] for w in weights]
    padded_dims = [_round_up(d, _LANES) for d in dims]
    pw, pb = [], []
    for l, (w, b) in enumerate(zip(weights, biases)):
        din_p, dout_p = padded_dims[l], padded_dims[l + 1]
        pw.append(jnp.pad(w, ((0, din_p - w.shape[0]), (0, dout_p - w.shape[1]))))
        b2d = b.reshape(1, -1)
        pb.append(jnp.pad(b2d, ((0, 0), (0, dout_p - b2d.shape[1]))))
    d_in_p, d_out_p = padded_dims[0], padded_dims[-1]

    params_bytes = sum(int(a.size) * a.dtype.itemsize for a in pw + pb)

    vmem_cap = _vmem_capacity_bytes()
    budget = int(0.85 * vmem_cap)

    # sublane packing: f32 -> 8 rows, bf16 -> 16, int8/fp8 -> 32
    sub = max(32 // in_item, 32 // out_item)

    def foot(t):
        return _fused_footprint_bytes(t, d_in_p, padded_dims[1:], params_bytes,
                                      in_item, out_item)

    # ---- batch tile: largest that fits the real VMEM budget; >=2 grid steps
    # for moderately large B so both v7x TensorCores get batch tiles. ----
    if tile_b is None:
        if B >= 256:
            tile_b = min(512, _round_up(-(-B // 2), sub))
        else:
            tile_b = _round_up(B, sub)
        while tile_b > sub and foot(tile_b) > budget:
            tile_b = max(sub, _round_up(tile_b // 2, sub))
    else:
        tile_b = _round_up(tile_b, sub)

    B_p = _round_up(B, tile_b)
    x_p = jnp.pad(x, ((0, B_p - B), (0, d_in_p - d_in)))

    use_fused = (not force_tiled) and foot(tile_b) <= budget
    if use_fused:
        out_p = _mlp_fused(x_p, pw, pb, tile_b=tile_b, out_dtype=out_dtype,
                           vmem_cap=vmem_cap, params_bytes=params_bytes,
                           footprint=foot(tile_b))
    else:
        # Weight chain too big for per-core VMEM: per-layer tiled matmuls.
        h = x_p
        for l in range(num_layers):
            layer_dtype = out_dtype if l == num_layers - 1 else compute_dtype
            h = _linear_tiled(h, pw[l], pb[l], out_dtype=layer_dtype,
                              vmem_cap=vmem_cap)
        out_p = h

    # Slice away batch padding and lane padding (no-op when nothing was padded).
    return out_p[:B, :d_out]


# --------------------------------------------------------------------------- #
# Reference + test
# --------------------------------------------------------------------------- #
def _init_params(key, dims):
    """Deterministic PyTorch-style init: U(-1/sqrt(fan_in), 1/sqrt(fan_in))."""
    weights, biases = [], []
    for din, dout in zip(dims[:-1], dims[1:]):
        kw, kb, key = jax.random.split(key, 3)
        bound = 1.0 / (din ** 0.5)
        # stored already transposed relative to torch: (din, dout)
        w = jax.random.uniform(kw, (din, dout), jnp.float32, -bound, bound)
        b = jax.random.uniform(kb, (1, dout), jnp.float32, -bound, bound)
        weights.append(w)
        biases.append(b)
    return weights, biases


def _mlp_ref(x, weights, biases):
    h = x
    for w, b in zip(weights, biases):
        h = h @ w + b
    return h


if __name__ == "__main__":
    key = jax.random.PRNGKey(0)
    dims = (32, 64, 16)          # MLP(dims=[32, 64, 16], act=None)
    kx, kp, kx2 = jax.random.split(key, 3)

    weights, biases = _init_params(kp, dims)

    # --- small batch, f32: fused-chain path, single-block grid ---
    x = jax.random.normal(kx, (16, dims[0]), jnp.float32)
    ref = _mlp_ref(x, weights, biases)
    out = jax.block_until_ready(mlp_pallas(x, weights, biases))
    assert out.shape == (16, dims[-1])
    assert jnp.allclose(out, ref, atol=1e-4, rtol=1e-4), "f32 mismatch vs reference"

    # --- larger batch: >=2 batch tiles (megacore-parallel grid) + batch padding ---
    x2 = jax.random.normal(kx2, (384, dims[0]), jnp.float32)
    ref2 = _mlp_ref(x2, weights, biases)
    out2 = jax.block_until_ready(mlp_pallas(x2, weights, biases))
    assert out2.shape == (384, dims[-1])
    assert jnp.allclose(out2, ref2, atol=1e-4, rtol=1e-4), "multi-tile mismatch"

    # --- per-layer tiled fallback path (auto-selected for VMEM-exceeding chains) ---
    out3 = jax.block_until_ready(mlp_pallas(x, weights, biases, force_tiled=True))
    assert out3.shape == (16, dims[-1])
    assert jnp.allclose(out3, ref, atol=1e-4, rtol=1e-4), "tiled-fallback mismatch"

    # --- bf16 MXU fast path (bf16 operands, f32 accumulation in-kernel) ---
    x_bf = x.astype(jnp.bfloat16)
    w_bf = [w.astype(jnp.bfloat16) for w in weights]
    b_bf = [b.astype(jnp.bfloat16) for b in biases]
    out_bf = jax.block_until_ready(
        mlp_pallas(x_bf, w_bf, b_bf, out_dtype=jnp.float32))
    assert out_bf.shape == (16, dims[-1])
    assert jnp.allclose(out_bf, ref, atol=5e-2, rtol=5e-2), "bf16 mismatch vs reference"

    print("KERNEL_OK")
</pallas_src>

<mosaic_0001>
module attributes {stable_mosaic.version = 11 : i64} {
  func.func @_mlp_fused_kernel(%arg0: i32, %arg1: memref<16x128xf32, #tpu.memory_space<vmem>>, %arg2: memref<128x128xf32, #tpu.memory_space<vmem>>, %arg3: memref<1x128xf32, #tpu.memory_space<vmem>>, %arg4: memref<128x128xf32, #tpu.memory_space<vmem>>, %arg5: memref<1x128xf32, #tpu.memory_space<vmem>>, %arg6: memref<16x128xf32, #tpu.memory_space<vmem>>) attributes {dimension_semantics = [#tpu.dimension_semantics<parallel>], iteration_bounds = array<i64: 1>, scalar_prefetch = 0 : i64, scratch_operands = 0 : i64, tpu.core_type = #tpu.core_type<tc>, window_params = [{transform_indices = @transform_0, window_bounds = array<i64: 16, 128>}, {pipeline_mode = #tpu.pipeline_mode<synchronous>, transform_indices = @transform_1, window_bounds = array<i64: 128, 128>}, {pipeline_mode = #tpu.pipeline_mode<synchronous>, transform_indices = @transform_2, window_bounds = array<i64: 1, 128>}, {pipeline_mode = #tpu.pipeline_mode<synchronous>, transform_indices = @transform_3, window_bounds = array<i64: 128, 128>}, {pipeline_mode = #tpu.pipeline_mode<synchronous>, transform_indices = @transform_4, window_bounds = array<i64: 1, 128>}, {transform_indices = @transform_5, window_bounds = array<i64: 16, 128>}]} {
    %c0 = arith.constant 0 : index
    %c0_0 = arith.constant 0 : index
    %0 = vector.load %arg1[%c0, %c0_0] : memref<16x128xf32, #tpu.memory_space<vmem>>, vector<16x128xf32>
    %c0_1 = arith.constant 0 : index
    %c0_2 = arith.constant 0 : index
    %1 = vector.load %arg2[%c0_1, %c0_2] : memref<128x128xf32, #tpu.memory_space<vmem>>, vector<128x128xf32>
    %cst = arith.constant dense<0.000000e+00> : vector<16x128xf32>
    %2 = tpu.matmul %0, %1, %cst {dimension_numbers = #tpu.dot_dimension_numbers<[1], [0], [0], [1], [0, 0, 1, 1], [], []>} : vector<16x128xf32>, vector<128x128xf32>, vector<16x128xf32> -> vector<16x128xf32>
    %c0_3 = arith.constant 0 : index
    %c0_4 = arith.constant 0 : index
    %3 = vector.load %arg3[%c0_3, %c0_4] : memref<1x128xf32, #tpu.memory_space<vmem>>, vector<1x128xf32>
    %4 = vector.broadcast %3 : vector<1x128xf32> to vector<16x128xf32>
    %5 = arith.addf %2, %4 : vector<16x128xf32>
    %c0_5 = arith.constant 0 : index
    %c0_6 = arith.constant 0 : index
    %6 = vector.load %arg4[%c0_5, %c0_6] : memref<128x128xf32, #tpu.memory_space<vmem>>, vector<128x128xf32>
    %cst_7 = arith.constant dense<0.000000e+00> : vector<16x128xf32>
    %7 = tpu.matmul %5, %6, %cst_7 {dimension_numbers = #tpu.dot_dimension_numbers<[1], [0], [0], [1], [0, 0, 1, 1], [], []>} : vector<16x128xf32>, vector<128x128xf32>, vector<16x128xf32> -> vector<16x128xf32>
    %c0_8 = arith.constant 0 : index
    %c0_9 = arith.constant 0 : index
    %8 = vector.load %arg5[%c0_8, %c0_9] : memref<1x128xf32, #tpu.memory_space<vmem>>, vector<1x128xf32>
    %9 = vector.broadcast %8 : vector<1x128xf32> to vector<16x128xf32>
    %10 = arith.addf %7, %9 : vector<16x128xf32>
    %c0_10 = arith.constant 0 : index
    %c0_11 = arith.constant 0 : index
    %11 = vector.load %arg6[%c0_10, %c0_11] : memref<16x128xf32, #tpu.memory_space<vmem>>, vector<16x128xf32>
    tpu.vector_store %arg6[%c0_10, %c0_11], %10 {strides = array<i32>} : memref<16x128xf32, #tpu.memory_space<vmem>>, vector<16x128xf32>,
    return
  }
  func.func @transform_0(%arg0: i32) -> (i32, i32) {
    %c0_i32 = arith.constant 0 : i32
    %c0_i32_0 = arith.constant 0 : i32
    return %arg0, %c0_i32 : i32, i32
  }
  func.func @transform_1(%arg0: i32) -> (i32, i32) {
    %c0_i32 = arith.constant 0 : i32
    %c0_i32_0 = arith.constant 0 : i32
    %c0_i32_1 = arith.constant 0 : i32
    return %c0_i32, %c0_i32_0 : i32, i32
  }
  func.func @transform_2(%arg0: i32) -> (i32, i32) {
    %c0_i32 = arith.constant 0 : i32
    %c0_i32_0 = arith.constant 0 : i32
    %c0_i32_1 = arith.constant 0 : i32
    return %c0_i32, %c0_i32_0 : i32, i32
  }
  func.func @transform_3(%arg0: i32) -> (i32, i32) {
    %c0_i32 = arith.constant 0 : i32
    %c0_i32_0 = arith.constant 0 : i32
    %c0_i32_1 = arith.constant 0 : i32
    return %c0_i32, %c0_i32_0 : i32, i32
  }
  func.func @transform_4(%arg0: i32) -> (i32, i32) {
    %c0_i32 = arith.constant 0 : i32
    %c0_i32_0 = arith.constant 0 : i32
    %c0_i32_1 = arith.constant 0 : i32
    return %c0_i32, %c0_i32_0 : i32, i32
  }
  func.func @transform_5(%arg0: i32) -> (i32, i32) {
    %c0_i32 = arith.constant 0 : i32
    %c0_i32_0 = arith.constant 0 : i32
    return %arg0, %c0_i32 : i32, i32
  }
}

module attributes {stable_mosaic.version = 11 : i64} {
  func.func @_mlp_fused_kernel(%arg0: i32, %arg1: memref<16x128xf32, #tpu.memory_space<vmem>>, %arg2: memref<128x128xf32, #tpu.memory_space<vmem>>, %arg3: memref<1x128xf32, #tpu.memory_space<vmem>>, %arg4: memref<128x128xf32, #tpu.memory_space<vmem>>, %arg5: memref<1x128xf32, #tpu.memory_space<vmem>>, %arg6: memref<16x128xf32, #tpu.memory_space<vmem>>) attributes {dimension_semantics = [#tpu.dimension_semantics<parallel>], iteration_bounds = array<i64: 1>, scalar_prefetch = 0 : i64, scratch_operands = 0 : i64, tpu.core_type = #tpu.core_type<tc>, window_params = [{transform_indices = @transform_0, window_bounds = array<i64: 16, 128>}, {pipeline_mode = #tpu.pipeline_mode<synchronous>, transform_indices = @transform_1, window_bounds = array<i64: 128, 128>}, {pipeline_mode = #tpu.pipeline_mode<synchronous>, transform_indices = @transform_2, window_bounds = array<i64: 1, 128>}, {pipeline_mode = #tpu.pipeline_mode<synchronous>, transform_indices = @transform_3, window_bounds = array<i64: 128, 128>}, {pipeline_mode = #tpu.pipeline_mode<synchronous>, transform_indices = @transform_4, window_bounds = array<i64: 1, 128>}, {transform_indices = @transform_5, window_bounds = array<i64: 16, 128>}]} {
    %c0 = arith.constant 0 : index
    %c0_0 = arith.constant 0 : index
    %0 = vector.load %arg1[%c0, %c0_0] : memref<16x128xf32, #tpu.memory_space<vmem>>, vector<16x128xf32>
    %c0_1 = arith.constant 0 : index
    %c0_2 = arith.constant 0 : index
    %1 = vector.load %arg2[%c0_1, %c0_2] : memref<128x128xf32, #tpu.memory_space<vmem>>, vector<128x128xf32>
    %cst = arith.constant dense<0.000000e+00> : vector<16x128xf32>
    %2 = tpu.matmul %0, %1, %cst {dimension_numbers = #tpu.dot_dimension_numbers<[1], [0], [0], [1], [0, 0, 1, 1], [], []>} : vector<16x128xf32>, vector<128x128xf32>, vector<16x128xf32> -> vector<16x128xf32>
    %c0_3 = arith.constant 0 : index
    %c0_4 = arith.constant 0 : index
    %3 = vector.load %arg3[%c0_3, %c0_4] : memref<1x128xf32, #tpu.memory_space<vmem>>, vector<1x128xf32>
    %4 = vector.broadcast %3 : vector<1x128xf32> to vector<16x128xf32>
    %5 = arith.addf %2, %4 : vector<16x128xf32>
    %c0_5 = arith.constant 0 : index
    %c0_6 = arith.constant 0 : index
    %6 = vector.load %arg4[%c0_5, %c0_6] : memref<128x128xf32, #tpu.memory_space<vmem>>, vector<128x128xf32>
    %cst_7 = arith.constant dense<0.000000e+00> : vector<16x128xf32>
    %7 = tpu.matmul %5, %6, %cst_7 {dimension_numbers = #tpu.dot_dimension_numbers<[1], [0], [0], [1], [0, 0, 1, 1], [], []>} : vector<16x128xf32>, vector<128x128xf32>, vector<16x128xf32> -> vector<16x128xf32>
    %c0_8 = arith.constant 0 : index
    %c0_9 = arith.constant 0 : index
    %8 = vector.load %arg5[%c0_8, %c0_9] : memref<1x128xf32, #tpu.memory_space<vmem>>, vector<1x128xf32>
    %9 = vector.broadcast %8 : vector<1x128xf32> to vector<16x128xf32>
    %10 = arith.addf %7, %9 : vector<16x128xf32>
    %c0_10 = arith.constant 0 : index
    %c0_11 = arith.constant 0 : index
    %11 = vector.load %arg6[%c0_10, %c0_11] : memref<16x128xf32, #tpu.memory_space<vmem>>, vector<16x128xf32>
    tpu.vector_store %arg6[%c0_10, %c0_11], %10 {strides = array<i32>} : memref<16x128xf32, #tpu.memory_space<vmem>>, vector<16x128xf32>,
    return
  }
  func.func @transform_0(%arg0: i32) -> (i32, i32) {
    %c0_i32 = arith.constant 0 : i32
    %c0_i32_0 = arith.constant 0 : i32
    return %arg0, %c0_i32 : i32, i32
  }
  func.func @transform_1(%arg0: i32) -> (i32, i32) {
    %c0_i32 = arith.constant 0 : i32
    %c0_i32_0 = arith.constant 0 : i32
    %c0_i32_1 = arith.constant 0 : i32
    return %c0_i32, %c0_i32_0 : i32, i32
  }
  func.func @transform_2(%arg0: i32) -> (i32, i32) {
    %c0_i32 = arith.constant 0 : i32
    %c0_i32_0 = arith.constant 0 : i32
    %c0_i32_1 = arith.constant 0 : i32
    return %c0_i32, %c0_i32_0 : i32, i32
  }
  func.func @transform_3(%arg0: i32) -> (i32, i32) {
    %c0_i32 = arith.constant 0 : i32
    %c0_i32_0 = arith.constant 0 : i32
    %c0_i32_1 = arith.constant 0 : i32
    return %c0_i32, %c0_i32_0 : i32, i32
  }
  func.func @transform_4(%arg0: i32) -> (i32, i32) {
    %c0_i32 = arith.constant 0 : i32
    %c0_i32_0 = arith.constant 0 : i32
    %c0_i32_1 = arith.constant 0 : i32
    return %c0_i32, %c0_i32_0 : i32, i32
  }
  func.func @transform_5(%arg0: i32) -> (i32, i32) {
    %c0_i32 = arith.constant 0 : i32
    %c0_i32_0 = arith.constant 0 : i32
    return %arg0, %c0_i32 : i32, i32
  }
}

</mosaic_0001>

<llo_original>
// kernel: tpu_custom_call.1
$region0: #{tpu_custom_call.1}
  #allocation0 [shape = 'u32[]', space=smem, size = 0x4, offset = 0x4, fixed_abs, tag = 'smem constant byte address 0x4 - core index']
  #allocation1 [shape = 'u32[144,128]{1,0:T(1,128)}', space=vmem, size = 0x12000, scoped, tag = 'internal scratch']
  %s0 = inlined_call_operand.hbm [shape: f32[16,128], index: 0, kind: input, shape index: {}]
  %s1 = inlined_call_operand.hbm [shape: f32[128,128], index: 1, kind: input, shape index: {}]
  %s2 = inlined_call_operand.vmem [shape: f32[1,128], index: 2, kind: input, shape index: {}]
  %s3 = inlined_call_operand.hbm [shape: f32[128,128], index: 3, kind: input, shape index: {}]
  %s4 = inlined_call_operand.vmem [shape: f32[1,128], index: 4, kind: input, shape index: {}]
  %s5 = inlined_call_operand.hbm [shape: f32[16,128], index: 5, kind: output, shape index: {}]
  %s6 = sld [smem:[#allocation0]]
  $region42: #{tpu_custom_call.1} parent=0
    _
  %s8 = ssub.s32 1, %s6
  %s9 = scalar_select 0, %s8, %s6
  $region1: #{tpu_custom_call.1} parent=0
    #allocation2 [shape = 'u8[8192]{0}', space=vmem, size = 0x2000, scoped, tag = 'input window, operand 0, single buffered']
    #allocation3 [shape = 's32[1]{0}', space=sflag, size = 0x4, scoped, tag = 'scoped memory for tpu_custom_call.1']
    #allocation4 [shape = 's32[1]{0}', space=sflag, size = 0x4, scoped, tag = 'scoped memory for tpu_custom_call.1']
    #allocation5 [shape = 'u8[65536]{0}', space=vmem, size = 0x10000, scoped, tag = 'input window, operand 1, single buffered']
    #allocation6 [shape = 's32[1]{0}', space=sflag, size = 0x4, scoped, tag = 'scoped memory for tpu_custom_call.1']
    #allocation7 [shape = 'u8[65536]{0}', space=vmem, size = 0x10000, scoped, tag = 'input window, operand 3, single buffered']
    #allocation8 [shape = 'u8[8192]{0}', space=vmem, size = 0x2000, scoped, tag = 'output window, operand 0, single buffered']
    %10 = vsyncpa [#allocation3], 0
    %11 = vsyncpa [#allocation6], 0
    %12 = vsyncpa [#allocation4], 0
    // Predicated region
    $region2: #{tpu_custom_call.1} parent=1 // pred_check
      _
    $region3: #{tpu_custom_call.1} parent=1 // pred_check_branch
      %14 = sbr.rel (0) target = $region5
    $region4: #{tpu_custom_call.1} parent=1 // pred_region
      %s16 = ssub.s32 256, 256
      %17 = vsyncadd [#allocation3], %s16
      %s18 = sshll.u32 [#allocation2], 4
      %s19 = int_to_ptr.vmem [resolvable:$true] %s18
      %24 = dma.hbm_to_vmem [thread:$0]  %s0, 256, %s19, [#allocation3], 128, 128, 8
    $region5: #{tpu_custom_call.1} parent=1 // pred_fallthru
      _
    // Predicated region
    $region6: #{tpu_custom_call.1} parent=1 // pred_check
      _
    $region7: #{tpu_custom_call.1} parent=1 // pred_check_branch
      %26 = sbr.rel (0) target = $region9
    $region8: #{tpu_custom_call.1} parent=1 // pred_region
      %s28 = ssub.s32 2048, 2048
      %29 = vsyncadd [#allocation6], %s28
      %s30 = sshll.u32 [#allocation5], 4
      %s31 = int_to_ptr.vmem [resolvable:$true] %s30
      %36 = dma.hbm_to_vmem [thread:$0]  %s1, 2048, %s31, [#allocation6], 128, 128, 8
    $region9: #{tpu_custom_call.1} parent=1 // pred_fallthru
      _
    // Predicated region
    $region10: #{tpu_custom_call.1} parent=1 // pred_check
      _
    $region11: #{tpu_custom_call.1} parent=1 // pred_check_branch
      %38 = sbr.rel (0) target = $region13
    $region12: #{tpu_custom_call.1} parent=1 // pred_region
      _
    $region13: #{tpu_custom_call.1} parent=1 // pred_fallthru
      _
    // Predicated region
    $region14: #{tpu_custom_call.1} parent=1 // pred_check
      _
    $region15: #{tpu_custom_call.1} parent=1 // pred_check_branch
      %40 = sbr.rel (0) target = $region17
    $region16: #{tpu_custom_call.1} parent=1 // pred_region
      %s42 = ssub.s32 2048, 2048
      %43 = vsyncadd [#allocation6], %s42
      %s44 = sshll.u32 [#allocation7], 4
      %s45 = int_to_ptr.vmem [resolvable:$true] %s44
      %50 = dma.hbm_to_vmem [thread:$0]  %s3, 2048, %s45, [#allocation6], 128, 128, 8
    $region17: #{tpu_custom_call.1} parent=1 // pred_fallthru
      _
    // Predicated region
    $region18: #{tpu_custom_call.1} parent=1 // pred_check
      _
    $region19: #{tpu_custom_call.1} parent=1 // pred_check_branch
      %52 = sbr.rel (0) target = $region21
    $region20: #{tpu_custom_call.1} parent=1 // pred_region
      _
    $region21: #{tpu_custom_call.1} parent=1 // pred_fallthru
      _
    // Predicated region
    $region22: #{tpu_custom_call.1} parent=1 // pred_check
      _
    $region23: #{tpu_custom_call.1} parent=1 // pred_check_branch
      %54 = sbr.rel (0) target = $region25
    $region24: #{tpu_custom_call.1} parent=1 // pred_region
      %55 = dma.done [#allocation3], 256
    $region25: #{tpu_custom_call.1} parent=1 // pred_fallthru
      _
    // Predicated region
    $region26: #{tpu_custom_call.1} parent=1 // pred_check
      _
    $region27: #{tpu_custom_call.1} parent=1 // pred_check_branch
      %57 = sbr.rel (0) target = $region29
    $region28: #{tpu_custom_call.1} parent=1 // pred_region
      %58 = dma.done [#allocation6], 2048
    $region29: #{tpu_custom_call.1} parent=1 // pred_fallthru
      _
    // Predicated region
    $region30: #{tpu_custom_call.1} parent=1 // pred_check
      _
    $region31: #{tpu_custom_call.1} parent=1 // pred_check_branch
      %60 = sbr.rel (0) target = $region33
    $region32: #{tpu_custom_call.1} parent=1 // pred_region
      %61 = dma.done [#allocation6], 2048
    $region33: #{tpu_custom_call.1} parent=1 // pred_fallthru
      _
    %v62 = vld [vmem:[#allocation2] sm:$0xff]
    %v63 = vld [vmem:[#allocation2 + $0x8] sm:$0xff]
    %v64 = vld [vmem:[#allocation5] sm:$0xff]
    %v65 = vld [vmem:[#allocation5 + $0x8] sm:$0xff]
    %v66 = vld [vmem:[#allocation5 + $0x10] sm:$0xff]
    %v67 = vld [vmem:[#allocation5 + $0x18] sm:$0xff]
    %v68 = vld [vmem:[#allocation5 + $0x20] sm:$0xff]
    %v69 = vld [vmem:[#allocation5 + $0x28] sm:$0xff]
    %v70 = vld [vmem:[#allocation5 + $0x30] sm:$0xff]
    %v71 = vld [vmem:[#allocation5 + $0x38] sm:$0xff]
    %v72 = vld [vmem:[#allocation5 + $0x40] sm:$0xff]
    %v73 = vld [vmem:[#allocation5 + $0x48] sm:$0xff]
    %v74 = vld [vmem:[#allocation5 + $0x50] sm:$0xff]
    %v75 = vld [vmem:[#allocation5 + $0x58] sm:$0xff]
    %v76 = vld [vmem:[#allocation5 + $0x60] sm:$0xff]
    %v77 = vld [vmem:[#allocation5 + $0x68] sm:$0xff]
    %v78 = vld [vmem:[#allocation5 + $0x70] sm:$0xff]
    %v79 = vld [vmem:[#allocation5 + $0x78] sm:$0xff]
    %v80 = vld [vmem:[%s2] sm:$0x1]
    %v82 = vlaneseq
    %v83 = vshrl.u32 %v82, 7
    %v84 = vsub.s32 0, %v83
    %v85 = vrot.slane %v80, %v84
    %87 = vmatprep.subr.mxu0 0.0
    %88 = vmatpush1.msra.mxu0 %v79
    %89 = vmatprep.subr.mxu0 0.0
    %90 = vmatpush1.msra.mxu0 %v78
    %91 = vmatprep.subr.mxu0 0.0
    %92 = vmatpush1.msra.mxu0 %v77
    %93 = vmatprep.subr.mxu0 0.0
    %94 = vmatpush1.msra.mxu0 %v76
    %95 = vmatprep.subr.mxu0 0.0
    %96 = vmatpush1.msra.mxu0 %v75
    %97 = vmatprep.subr.mxu0 0.0
    %98 = vmatpush1.msra.mxu0 %v74
    %99 = vmatprep.subr.mxu0 0.0
    %100 = vmatpush1.msra.mxu0 %v73
    %101 = vmatprep.subr.mxu0 0.0
    %102 = vmatpush1.msra.mxu0 %v72
    %103 = vmatprep.subr.mxu0 0.0
    %104 = vmatpush1.msra.mxu0 %v71
    %105 = vmatprep.subr.mxu0 0.0
    %106 = vmatpush1.msra.mxu0 %v70
    %107 = vmatprep.subr.mxu0 0.0
    %108 = vmatpush1.msra.mxu0 %v69
    %109 = vmatprep.subr.mxu0 0.0
    %110 = vmatpush1.msra.mxu0 %v68
    %111 = vmatprep.subr.mxu0 0.0
    %112 = vmatpush1.msra.mxu0 %v67
    %113 = vmatprep.subr.mxu0 0.0
    %114 = vmatpush1.msra.mxu0 %v66
    %115 = vmatprep.subr.mxu0 0.0
    %116 = vmatpush1.msra.mxu0 %v65
    %117 = vmatprep.subr.mxu0 0.0
    %118 = vmatpush1.msra.mxu0 %v64
    %119 = vmatprep.subr.mxu0 0.0
    %120 = vmatpush2.msra.mxu0 0.0
    %121 = vmatprep.subr.mxu0 0.0
    %122 = vmatpush2.msra.mxu0 0.0
    %123 = vmatprep.subr.mxu0 0.0
    %124 = vmatpush2.msra.mxu0 0.0
    %125 = vmatprep.subr.mxu0 0.0
    %126 = vmatpush2.msra.mxu0 0.0
    %127 = vmatprep.subr.mxu0 0.0
    %128 = vmatpush2.msra.mxu0 0.0
    %129 = vmatprep.subr.mxu0 0.0
    %130 = vmatpush2.msra.mxu0 0.0
    %131 = vmatprep.subr.mxu0 0.0
    %132 = vmatpush2.msra.mxu0 0.0
    %133 = vmatprep.subr.mxu0 0.0
    %134 = vmatpush2.msra.mxu0 0.0
    %135 = vmatprep.subr.mxu0 0.0
    %136 = vmatpush2.msra.mxu0 0.0
    %137 = vmatprep.subr.mxu0 0.0
    %138 = vmatpush2.msra.mxu0 0.0
    %139 = vmatprep.subr.mxu0 0.0
    %140 = vmatpush2.msra.mxu0 0.0
    %141 = vmatprep.subr.mxu0 0.0
    %142 = vmatpush2.msra.mxu0 0.0
    %143 = vmatprep.subr.mxu0 0.0
    %144 = vmatpush2.msra.mxu0 0.0
    %145 = vmatprep.subr.mxu0 0.0
    %146 = vmatpush2.msra.mxu0 0.0
    %147 = vmatprep.subr.mxu0 0.0
    %148 = vmatpush2.msra.mxu0 0.0
    %149 = vmatprep.subr.mxu0 0.0
    %150 = vmatpush2.msra.mxu0 0.0
    %151 = vmatprep.mubr.f32.mxu0 0.0
    %152 = vmatmul.mubr.f32.gmra.mxu0 %v62
    %v153 = vpop.f32.mrf.mxu0
    %v154 = vadd.f32 %v85, %v153
    %v155 = vpop.f32.mrf.mxu0
    %156 = vmatprep.mubr.f32.mxu0 0.0
    %157 = vmatmul.mubr.f32.gmra.mxu0 %v63
    %v158 = vpop.f32.mrf.mxu0
    %v159 = vadd.f32 %v85, %v158
    %v160 = vpop.f32.mrf.mxu0
    %161 = vdwg.mxu0
    %v162 = vld [vmem:[#allocation7] sm:$0xff]
    %v163 = vld [vmem:[#allocation7 + $0x8] sm:$0xff]
    %v164 = vld [vmem:[#allocation7 + $0x10] sm:$0xff]
    %v165 = vld [vmem:[#allocation7 + $0x18] sm:$0xff]
    %v166 = vld [vmem:[#allocation7 + $0x20] sm:$0xff]
    %v167 = vld [vmem:[#allocation7 + $0x28] sm:$0xff]
    %v168 = vld [vmem:[#allocation7 + $0x30] sm:$0xff]
    %v169 = vld [vmem:[#allocation7 + $0x38] sm:$0xff]
    %v170 = vld [vmem:[#allocation7 + $0x40] sm:$0xff]
    %v171 = vld [vmem:[#allocation7 + $0x48] sm:$0xff]
    %v172 = vld [vmem:[#allocation7 + $0x50] sm:$0xff]
    %v173 = vld [vmem:[#allocation7 + $0x58] sm:$0xff]
    %v174 = vld [vmem:[#allocation7 + $0x60] sm:$0xff]
    %v175 = vld [vmem:[#allocation7 + $0x68] sm:$0xff]
    %v176 = vld [vmem:[#allocation7 + $0x70] sm:$0xff]
    %v177 = vld [vmem:[#allocation7 + $0x78] sm:$0xff]
    %v178 = vld [vmem:[%s4] sm:$0x1]
    %v180 = vlaneseq
    %v181 = vshrl.u32 %v180, 7
    %v182 = vsub.s32 0, %v181
    %v183 = vrot.slane %v178, %v182
    %185 = vmatprep.subr.mxu0 0.0
    %186 = vmatpush1.msra.mxu0 %v177
    %187 = vmatprep.subr.mxu0 0.0
    %188 = vmatpush1.msra.mxu0 %v176
    %189 = vmatprep.subr.mxu0 0.0
    %190 = vmatpush1.msra.mxu0 %v175
    %191 = vmatprep.subr.mxu0 0.0
    %192 = vmatpush1.msra.mxu0 %v174
    %193 = vmatprep.subr.mxu0 0.0
    %194 = vmatpush1.msra.mxu0 %v173
    %195 = vmatprep.subr.mxu0 0.0
    %196 = vmatpush1.msra.mxu0 %v172
    %197 = vmatprep.subr.mxu0 0.0
    %198 = vmatpush1.msra.mxu0 %v171
    %199 = vmatprep.subr.mxu0 0.0
    %200 = vmatpush1.msra.mxu0 %v170
    %201 = vmatprep.subr.mxu0 0.0
    %202 = vmatpush1.msra.mxu0 %v169
    %203 = vmatprep.subr.mxu0 0.0
    %204 = vmatpush1.msra.mxu0 %v168
    %205 = vmatprep.subr.mxu0 0.0
    %206 = vmatpush1.msra.mxu0 %v167
    %207 = vmatprep.subr.mxu0 0.0
    %208 = vmatpush1.msra.mxu0 %v166
    %209 = vmatprep.subr.mxu0 0.0
    %210 = vmatpush1.msra.mxu0 %v165
    %211 = vmatprep.subr.mxu0 0.0
    %212 = vmatpush1.msra.mxu0 %v164
    %213 = vmatprep.subr.mxu0 0.0
    %214 = vmatpush1.msra.mxu0 %v163
    %215 = vmatprep.subr.mxu0 0.0
    %216 = vmatpush1.msra.mxu0 %v162
    %217 = vmatprep.subr.mxu0 0.0
    %218 = vmatpush2.msra.mxu0 0.0
    %219 = vmatprep.subr.mxu0 0.0
    %220 = vmatpush2.msra.mxu0 0.0
    %221 = vmatprep.subr.mxu0 0.0
    %222 = vmatpush2.msra.mxu0 0.0
    %223 = vmatprep.subr.mxu0 0.0
    %224 = vmatpush2.msra.mxu0 0.0
    %225 = vmatprep.subr.mxu0 0.0
    %226 = vmatpush2.msra.mxu0 0.0
    %227 = vmatprep.subr.mxu0 0.0
    %228 = vmatpush2.msra.mxu0 0.0
    %229 = vmatprep.subr.mxu0 0.0
    %230 = vmatpush2.msra.mxu0 0.0
    %231 = vmatprep.subr.mxu0 0.0
    %232 = vmatpush2.msra.mxu0 0.0
    %233 = vmatprep.subr.mxu0 0.0
    %234 = vmatpush2.msra.mxu0 0.0
    %235 = vmatprep.subr.mxu0 0.0
    %236 = vmatpush2.msra.mxu0 0.0
    %237 = vmatprep.subr.mxu0 0.0
    %238 = vmatpush2.msra.mxu0 0.0
    %239 = vmatprep.subr.mxu0 0.0
    %240 = vmatpush2.msra.mxu0 0.0
    %241 = vmatprep.subr.mxu0 0.0
    %242 = vmatpush2.msra.mxu0 0.0
    %243 = vmatprep.subr.mxu0 0.0
    %244 = vmatpush2.msra.mxu0 0.0
    %245 = vmatprep.subr.mxu0 0.0
    %246 = vmatpush2.msra.mxu0 0.0
    %247 = vmatprep.subr.mxu0 0.0
    %248 = vmatpush2.msra.mxu0 0.0
    %249 = vmatprep.mubr.f32.mxu0 0.0
    %250 = vmatmul.mubr.f32.gmra.mxu0 %v154
    %v251 = vpop.f32.mrf.mxu0
    %v252 = vadd.f32 %v183, %v251
    %v253 = vpop.f32.mrf.mxu0
    %254 = vmatprep.mubr.f32.mxu0 0.0
    %255 = vmatmul.mubr.f32.gmra.mxu0 %v159
    %v256 = vpop.f32.mrf.mxu0
    %v257 = vadd.f32 %v183, %v256
    %v258 = vpop.f32.mrf.mxu0
    %259 = vdwg.mxu0
    %260 = vst [vmem:[#allocation8] sm:$0xff] %v252
    %261 = vst [vmem:[#allocation8 + $0x8] sm:$0xff] %v257
    // Predicated region
    $region34: #{tpu_custom_call.1} parent=1 // pred_check
      _
    $region35: #{tpu_custom_call.1} parent=1 // pred_check_branch
      %263 = sbr.rel (0) target = $region37
    $region36: #{tpu_custom_call.1} parent=1 // pred_region
      %s265 = ssub.s32 256, 256
      %266 = vsyncadd [#allocation4], %s265
      %s267 = sshll.u32 [#allocation8], 4
      %s268 = int_to_ptr.vmem [resolvable:$true] %s267
      %273 = dma.vmem_to_hbm [thread:$0]  %s268, 256, %s5, [#allocation4], 128, 128, 8
    $region37: #{tpu_custom_call.1} parent=1 // pred_fallthru
      _
    // Predicated region
    $region38: #{tpu_custom_call.1} parent=1 // pred_check
      _
    $region39: #{tpu_custom_call.1} parent=1 // pred_check_branch
      %275 = sbr.rel (0) target = $region41
    $region40: #{tpu_custom_call.1} parent=1 // pred_region
      %276 = dma.done [#allocation4], 256
    $region41: #{tpu_custom_call.1} parent=1 // pred_fallthru
      _
    %277 = vsyncpa [#allocation3], 1
    %278 = vsyncpa [#allocation6], 1
    %279 = vsyncpa [#allocation4], 1

// kernel: tpu_custom_call.1
$region0: #{tpu_custom_call.1}
  #allocation0 [shape = 'u32[]', space=smem, size = 0x4, offset = 0x4, fixed_abs, tag = 'smem constant byte address 0x4 - core index']
  #allocation1 [shape = 'u32[144,128]{1,0:T(1,128)}', space=vmem, size = 0x12000, scoped, tag = 'internal scratch']
  %s0 = inlined_call_operand.hbm [shape: f32[16,128], index: 0, kind: input, shape index: {}]
  %s1 = inlined_call_operand.hbm [shape: f32[128,128], index: 1, kind: input, shape index: {}]
  %s2 = inlined_call_operand.vmem [shape: f32[1,128], index: 2, kind: input, shape index: {}]
  %s3 = inlined_call_operand.hbm [shape: f32[128,128], index: 3, kind: input, shape index: {}]
  %s4 = inlined_call_operand.vmem [shape: f32[1,128], index: 4, kind: input, shape index: {}]
  %s5 = inlined_call_operand.hbm [shape: f32[16,128], index: 5, kind: output, shape index: {}]
  %s6 = sld [smem:[#allocation0]]
  $region42: #{tpu_custom_call.1} parent=0
    _
  %s8 = ssub.s32 1, %s6
  %s9 = scalar_select 0, %s8, %s6
  $region1: #{tpu_custom_call.1} parent=0
    #allocation2 [shape = 'u8[8192]{0}', space=vmem, size = 0x2000, scoped, tag = 'input window, operand 0, single buffered']
    #allocation3 [shape = 's32[1]{0}', space=sflag, size = 0x4, scoped, tag = 'scoped memory for tpu_custom_call.1']
    #allocation4 [shape = 's32[1]{0}', space=sflag, size = 0x4, scoped, tag = 'scoped memory for tpu_custom_call.1']
    #allocation5 [shape = 'u8[65536]{0}', space=vmem, size = 0x10000, scoped, tag = 'input window, operand 1, single buffered']
    #allocation6 [shape = 's32[1]{0}', space=sflag, size = 0x4, scoped, tag = 'scoped memory for tpu_custom_call.1']
    #allocation7 [shape = 'u8[65536]{0}', space=vmem, size = 0x10000, scoped, tag = 'input window, operand 3, single buffered']
    #allocation8 [shape = 'u8[8192]{0}', space=vmem, size = 0x2000, scoped, tag = 'output window, operand 0, single buffered']
    %10 = vsyncpa [#allocation3], 0
    %11 = vsyncpa [#allocation6], 0
    %12 = vsyncpa [#allocation4], 0
    // Predicated region
    $region2: #{tpu_custom_call.1} parent=1 // pred_check
      _
    $region3: #{tpu_custom_call.1} parent=1 // pred_check_branch
      %14 = sbr.rel (0) target = $region5
    $region4: #{tpu_custom_call.1} parent=1 // pred_region
      %s16 = ssub.s32 256, 256
      %17 = vsyncadd [#allocation3], %s16
      %s18 = sshll.u32 [#allocation2], 4
      %s19 = int_to_ptr.vmem [resolvable:$true] %s18
      %24 = dma.hbm_to_vmem [thread:$0]  %s0, 256, %s19, [#allocation3], 128, 128, 8
    $region5: #{tpu_custom_call.1} parent=1 // pred_fallthru
      _
    // Predicated region
    $region6: #{tpu_custom_call.1} parent=1 // pred_check
      _
    $region7: #{tpu_custom_call.1} parent=1 // pred_check_branch
      %26 = sbr.rel (0) target = $region9
    $region8: #{tpu_custom_call.1} parent=1 // pred_region
      %s28 = ssub.s32 2048, 2048
      %29 = vsyncadd [#allocation6], %s28
      %s30 = sshll.u32 [#allocation5], 4
      %s31 = int_to_ptr.vmem [resolvable:$true] %s30
      %36 = dma.hbm_to_vmem [thread:$0]  %s1, 2048, %s31, [#allocation6], 128, 128, 8
    $region9: #{tpu_custom_call.1} parent=1 // pred_fallthru
      _
    // Predicated region
    $region10: #{tpu_custom_call.1} parent=1 // pred_check
      _
    $region11: #{tpu_custom_call.1} parent=1 // pred_check_branch
      %38 = sbr.rel (0) target = $region13
    $region12: #{tpu_custom_call.1} parent=1 // pred_region
      _
    $region13: #{tpu_custom_call.1} parent=1 // pred_fallthru
      _
    // Predicated region
    $region14: #{tpu_custom_call.1} parent=1 // pred_check
      _
    $region15: #{tpu_custom_call.1} parent=1 // pred_check_branch
      %40 = sbr.rel (0) target = $region17
    $region16: #{tpu_custom_call.1} parent=1 // pred_region
      %s42 = ssub.s32 2048, 2048
      %43 = vsyncadd [#allocation6], %s42
      %s44 = sshll.u32 [#allocation7], 4
      %s45 = int_to_ptr.vmem [resolvable:$true] %s44
      %50 = dma.hbm_to_vmem [thread:$0]  %s3, 2048, %s45, [#allocation6], 128, 128, 8
    $region17: #{tpu_custom_call.1} parent=1 // pred_fallthru
      _
    // Predicated region
    $region18: #{tpu_custom_call.1} parent=1 // pred_check
      _
    $region19: #{tpu_custom_call.1} parent=1 // pred_check_branch
      %52 = sbr.rel (0) target = $region21
    $region20: #{tpu_custom_call.1} parent=1 // pred_region
      _
    $region21: #{tpu_custom_call.1} parent=1 // pred_fallthru
      _
    // Predicated region
    $region22: #{tpu_custom_call.1} parent=1 // pred_check
      _
    $region23: #{tpu_custom_call.1} parent=1 // pred_check_branch
      %54 = sbr.rel (0) target = $region25
    $region24: #{tpu_custom_call.1} parent=1 // pred_region
      %55 = dma.done [#allocation3], 256
    $region25: #{tpu_custom_call.1} parent=1 // pred_fallthru
      _
    // Predicated region
    $region26: #{tpu_custom_call.1} parent=1 // pred_check
      _
    $region27: #{tpu_custom_call.1} parent=1 // pred_check_branch
      %57 = sbr.rel (0) target = $region29
    $region28: #{tpu_custom_call.1} parent=1 // pred_region
      %58 = dma.done [#allocation6], 2048
    $region29: #{tpu_custom_call.1} parent=1 // pred_fallthru
      _
    // Predicated region
    $region30: #{tpu_custom_call.1} parent=1 // pred_check
      _
    $region31: #{tpu_custom_call.1} parent=1 // pred_check_branch
      %60 = sbr.rel (0) target = $region33
    $region32: #{tpu_custom_call.1} parent=1 // pred_region
      %61 = dma.done [#allocation6], 2048
    $region33: #{tpu_custom_call.1} parent=1 // pred_fallthru
      _
    %v62 = vld [vmem:[#allocation2] sm:$0xff]
    %v63 = vld [vmem:[#allocation2 + $0x8] sm:$0xff]
    %v64 = vld [vmem:[#allocation5] sm:$0xff]
    %v65 = vld [vmem:[#allocation5 + $0x8] sm:$0xff]
    %v66 = vld [vmem:[#allocation5 + $0x10] sm:$0xff]
    %v67 = vld [vmem:[#allocation5 + $0x18] sm:$0xff]
    %v68 = vld [vmem:[#allocation5 + $0x20] sm:$0xff]
    %v69 = vld [vmem:[#allocation5 + $0x28] sm:$0xff]
    %v70 = vld [vmem:[#allocation5 + $0x30] sm:$0xff]
    %v71 = vld [vmem:[#allocation5 + $0x38] sm:$0xff]
    %v72 = vld [vmem:[#allocation5 + $0x40] sm:$0xff]
    %v73 = vld [vmem:[#allocation5 + $0x48] sm:$0xff]
    %v74 = vld [vmem:[#allocation5 + $0x50] sm:$0xff]
    %v75 = vld [vmem:[#allocation5 + $0x58] sm:$0xff]
    %v76 = vld [vmem:[#allocation5 + $0x60] sm:$0xff]
    %v77 = vld [vmem:[#allocation5 + $0x68] sm:$0xff]
    %v78 = vld [vmem:[#allocation5 + $0x70] sm:$0xff]
    %v79 = vld [vmem:[#allocation5 + $0x78] sm:$0xff]
    %v80 = vld [vmem:[%s2] sm:$0x1]
    %v82 = vlaneseq
    %v83 = vshrl.u32 %v82, 7
    %v84 = vsub.s32 0, %v83
    %v85 = vrot.slane %v80, %v84
    %87 = vmatprep.subr.mxu0 0.0
    %88 = vmatpush1.msra.mxu0 %v79
    %89 = vmatprep.subr.mxu0 0.0
    %90 = vmatpush1.msra.mxu0 %v78
    %91 = vmatprep.subr.mxu0 0.0
    %92 = vmatpush1.msra.mxu0 %v77
    %93 = vmatprep.subr.mxu0 0.0
    %94 = vmatpush1.msra.mxu0 %v76
    %95 = vmatprep.subr.mxu0 0.0
    %96 = vmatpush1.msra.mxu0 %v75
    %97 = vmatprep.subr.mxu0 0.0
    %98 = vmatpush1.msra.mxu0 %v74
    %99 = vmatprep.subr.mxu0 0.0
    %100 = vmatpush1.msra.mxu0 %v73
    %101 = vmatprep.subr.mxu0 0.0
    %102 = vmatpush1.msra.mxu0 %v72
    %103 = vmatprep.subr.mxu0 0.0
    %104 = vmatpush1.msra.mxu0 %v71
    %105 = vmatprep.subr.mxu0 0.0
    %106 = vmatpush1.msra.mxu0 %v70
    %107 = vmatprep.subr.mxu0 0.0
    %108 = vmatpush1.msra.mxu0 %v69
    %109 = vmatprep.subr.mxu0 0.0
    %110 = vmatpush1.msra.mxu0 %v68
    %111 = vmatprep.subr.mxu0 0.0
    %112 = vmatpush1.msra.mxu0 %v67
    %113 = vmatprep.subr.mxu0 0.0
    %114 = vmatpush1.msra.mxu0 %v66
    %115 = vmatprep.subr.mxu0 0.0
    %116 = vmatpush1.msra.mxu0 %v65
    %117 = vmatprep.subr.mxu0 0.0
    %118 = vmatpush1.msra.mxu0 %v64
    %119 = vmatprep.subr.mxu0 0.0
    %120 = vmatpush2.msra.mxu0 0.0
    %121 = vmatprep.subr.mxu0 0.0
    %122 = vmatpush2.msra.mxu0 0.0
    %123 = vmatprep.subr.mxu0 0.0
    %124 = vmatpush2.msra.mxu0 0.0
    %125 = vmatprep.subr.mxu0 0.0
    %126 = vmatpush2.msra.mxu0 0.0
    %127 = vmatprep.subr.mxu0 0.0
    %128 = vmatpush2.msra.mxu0 0.0
    %129 = vmatprep.subr.mxu0 0.0
    %130 = vmatpush2.msra.mxu0 0.0
    %131 = vmatprep.subr.mxu0 0.0
    %132 = vmatpush2.msra.mxu0 0.0
    %133 = vmatprep.subr.mxu0 0.0
    %134 = vmatpush2.msra.mxu0 0.0
    %135 = vmatprep.subr.mxu0 0.0
    %136 = vmatpush2.msra.mxu0 0.0
    %137 = vmatprep.subr.mxu0 0.0
    %138 = vmatpush2.msra.mxu0 0.0
    %139 = vmatprep.subr.mxu0 0.0
    %140 = vmatpush2.msra.mxu0 0.0
    %141 = vmatprep.subr.mxu0 0.0
    %142 = vmatpush2.msra.mxu0 0.0
    %143 = vmatprep.subr.mxu0 0.0
    %144 = vmatpush2.msra.mxu0 0.0
    %145 = vmatprep.subr.mxu0 0.0
    %146 = vmatpush2.msra.mxu0 0.0
    %147 = vmatprep.subr.mxu0 0.0
    %148 = vmatpush2.msra.mxu0 0.0
    %149 = vmatprep.subr.mxu0 0.0
    %150 = vmatpush2.msra.mxu0 0.0
    %151 = vmatprep.mubr.f32.mxu0 0.0
    %152 = vmatmul.mubr.f32.gmra.mxu0 %v62
    %v153 = vpop.f32.mrf.mxu0
    %v154 = vadd.f32 %v85, %v153
    %v155 = vpop.f32.mrf.mxu0
    %156 = vmatprep.mubr.f32.mxu0 0.0
    %157 = vmatmul.mubr.f32.gmra.mxu0 %v63
    %v158 = vpop.f32.mrf.mxu0
    %v159 = vadd.f32 %v85, %v158
    %v160 = vpop.f32.mrf.mxu0
    %161 = vdwg.mxu0
    %v162 = vld [vmem:[#allocation7] sm:$0xff]
    %v163 = vld [vmem:[#allocation7 + $0x8] sm:$0xff]
    %v164 = vld [vmem:[#allocation7 + $0x10] sm:$0xff]
    %v165 = vld [vmem:[#allocation7 + $0x18] sm:$0xff]
    %v166 = vld [vmem:[#allocation7 + $0x20] sm:$0xff]
    %v167 = vld [vmem:[#allocation7 + $0x28] sm:$0xff]
    %v168 = vld [vmem:[#allocation7 + $0x30] sm:$0xff]
    %v169 = vld [vmem:[#allocation7 + $0x38] sm:$0xff]
    %v170 = vld [vmem:[#allocation7 + $0x40] sm:$0xff]
    %v171 = vld [vmem:[#allocation7 + $0x48] sm:$0xff]
    %v172 = vld [vmem:[#allocation7 + $0x50] sm:$0xff]
    %v173 = vld [vmem:[#allocation7 + $0x58] sm:$0xff]
    %v174 = vld [vmem:[#allocation7 + $0x60] sm:$0xff]
    %v175 = vld [vmem:[#allocation7 + $0x68] sm:$0xff]
    %v176 = vld [vmem:[#allocation7 + $0x70] sm:$0xff]
    %v177 = vld [vmem:[#allocation7 + $0x78] sm:$0xff]
    %v178 = vld [vmem:[%s4] sm:$0x1]
    %v180 = vlaneseq
    %v181 = vshrl.u32 %v180, 7
    %v182 = vsub.s32 0, %v181
    %v183 = vrot.slane %v178, %v182
    %185 = vmatprep.subr.mxu0 0.0
    %186 = vmatpush1.msra.mxu0 %v177
    %187 = vmatprep.subr.mxu0 0.0
    %188 = vmatpush1.msra.mxu0 %v176
    %189 = vmatprep.subr.mxu0 0.0
    %190 = vmatpush1.msra.mxu0 %v175
    %191 = vmatprep.subr.mxu0 0.0
    %192 = vmatpush1.msra.mxu0 %v174
    %193 = vmatprep.subr.mxu0 0.0
    %194 = vmatpush1.msra.mxu0 %v173
    %195 = vmatprep.subr.mxu0 0.0
    %196 = vmatpush1.msra.mxu0 %v172
    %197 = vmatprep.subr.mxu0 0.0
    %198 = vmatpush1.msra.mxu0 %v171
    %199 = vmatprep.subr.mxu0 0.0
    %200 = vmatpush1.msra.mxu0 %v170
    %201 = vmatprep.subr.mxu0 0.0
    %202 = vmatpush1.msra.mxu0 %v169
    %203 = vmatprep.subr.mxu0 0.0
    %204 = vmatpush1.msra.mxu0 %v168
    %205 = vmatprep.subr.mxu0 0.0
    %206 = vmatpush1.msra.mxu0 %v167
    %207 = vmatprep.subr.mxu0 0.0
    %208 = vmatpush1.msra.mxu0 %v166
    %209 = vmatprep.subr.mxu0 0.0
    %210 = vmatpush1.msra.mxu0 %v165
    %211 = vmatprep.subr.mxu0 0.0
    %212 = vmatpush1.msra.mxu0 %v164
    %213 = vmatprep.subr.mxu0 0.0
    %214 = vmatpush1.msra.mxu0 %v163
    %215 = vmatprep.subr.mxu0 0.0
    %216 = vmatpush1.msra.mxu0 %v162
    %217 = vmatprep.subr.mxu0 0.0
    %218 = vmatpush2.msra.mxu0 0.0
    %219 = vmatprep.subr.mxu0 0.0
    %220 = vmatpush2.msra.mxu0 0.0
    %221 = vmatprep.subr.mxu0 0.0
    %222 = vmatpush2.msra.mxu0 0.0
    %223 = vmatprep.subr.mxu0 0.0
    %224 = vmatpush2.msra.mxu0 0.0
    %225 = vmatprep.subr.mxu0 0.0
    %226 = vmatpush2.msra.mxu0 0.0
    %227 = vmatprep.subr.mxu0 0.0
    %228 = vmatpush2.msra.mxu0 0.0
    %229 = vmatprep.subr.mxu0 0.0
    %230 = vmatpush2.msra.mxu0 0.0
    %231 = vmatprep.subr.mxu0 0.0
    %232 = vmatpush2.msra.mxu0 0.0
    %233 = vmatprep.subr.mxu0 0.0
    %234 = vmatpush2.msra.mxu0 0.0
    %235 = vmatprep.subr.mxu0 0.0
    %236 = vmatpush2.msra.mxu0 0.0
    %237 = vmatprep.subr.mxu0 0.0
    %238 = vmatpush2.msra.mxu0 0.0
    %239 = vmatprep.subr.mxu0 0.0
    %240 = vmatpush2.msra.mxu0 0.0
    %241 = vmatprep.subr.mxu0 0.0
    %242 = vmatpush2.msra.mxu0 0.0
    %243 = vmatprep.subr.mxu0 0.0
    %244 = vmatpush2.msra.mxu0 0.0
    %245 = vmatprep.subr.mxu0 0.0
    %246 = vmatpush2.msra.mxu0 0.0
    %247 = vmatprep.subr.mxu0 0.0
    %248 = vmatpush2.msra.mxu0 0.0
    %249 = vmatprep.mubr.f32.mxu0 0.0
    %250 = vmatmul.mubr.f32.gmra.mxu0 %v154
    %v251 = vpop.f32.mrf.mxu0
    %v252 = vadd.f32 %v183, %v251
    %v253 = vpop.f32.mrf.mxu0
    %254 = vmatprep.mubr.f32.mxu0 0.0
    %255 = vmatmul.mubr.f32.gmra.mxu0 %v159
    %v256 = vpop.f32.mrf.mxu0
    %v257 = vadd.f32 %v183, %v256
    %v258 = vpop.f32.mrf.mxu0
    %259 = vdwg.mxu0
    %260 = vst [vmem:[#allocation8] sm:$0xff] %v252
    %261 = vst [vmem:[#allocation8 + $0x8] sm:$0xff] %v257
    // Predicated region
    $region34: #{tpu_custom_call.1} parent=1 // pred_check
      _
    $region35: #{tpu_custom_call.1} parent=1 // pred_check_branch
      %263 = sbr.rel (0) target = $region37
    $region36: #{tpu_custom_call.1} parent=1 // pred_region
      %s265 = ssub.s32 256, 256
      %266 = vsyncadd [#allocation4], %s265
      %s267 = sshll.u32 [#allocation8], 4
      %s268 = int_to_ptr.vmem [resolvable:$true] %s267
      %273 = dma.vmem_to_hbm [thread:$0]  %s268, 256, %s5, [#allocation4], 128, 128, 8
    $region37: #{tpu_custom_call.1} parent=1 // pred_fallthru
      _
    // Predicated region
    $region38: #{tpu_custom_call.1} parent=1 // pred_check
      _
    $region39: #{tpu_custom_call.1} parent=1 // pred_check_branch
      %275 = sbr.rel (0) target = $region41
    $region40: #{tpu_custom_call.1} parent=1 // pred_region
      %276 = dma.done [#allocation4], 256
    $region41: #{tpu_custom_call.1} parent=1 // pred_fallthru
      _
    %277 = vsyncpa [#allocation3], 1
    %278 = vsyncpa [#allocation6], 1
    %279 = vsyncpa [#allocation4], 1

</llo_original>
